<compile_context>
chip_gen: v6e
topology: v6e:2x2x1
jax: 0.10.0
libtpu: 0.0.40
codegen_flags: <defaults>
</compile_context>

<pallas_src>
import functools

import numpy as np
import jax
import jax.numpy as jnp
from jax.experimental import pallas as pl
from jax.experimental.pallas import tpu as pltpu


def _round_up(x, m):
    return (x + m - 1) // m * m


def _pick_tk(kp):
    for tk in (2048, 1536, 1152, 1024, 768, 512, 384, 256, 128):
        if kp % tk == 0:
            return tk
    return kp


def _pick_tn(np_):
    return 256 if np_ % 256 == 0 else 128


# Safe on v5e/v6e/v7x (>= v5e's 16 MiB default, < v7x's 64 MiB physical);
# actual per-step working sets stay well below this.
_VMEM_LIMIT = 32 * 1024 * 1024


# ---------------------------------------------------------------------------
# Pallas kernels
# ---------------------------------------------------------------------------
def _matmul_bn_act_kernel(x_ref, w_ref, b_ref, *rest, relu, has_identity):
    # K-tiled (tm,tk)@(tk,tn) on the MXU, f32 acc scratch, fused folded-BN
    # bias + optional residual-add + ReLU epilogue, bf16 store.
    if has_identity:
        id_ref, o_ref, acc_ref = rest
    else:
        o_ref, acc_ref = rest
        id_ref = None
    k = pl.program_id(2)

    @pl.when(k == 0)
    def _():
        acc_ref[...] = jnp.zeros_like(acc_ref)

    acc_ref[...] += jnp.dot(x_ref[...], w_ref[...],
                            preferred_element_type=jnp.float32)

    @pl.when(k == pl.num_programs(2) - 1)
    def _():
        y = acc_ref[...] + b_ref[...]
        if has_identity:
            y = y + id_ref[...].astype(jnp.float32)
        if relu:
            y = jnp.maximum(y, 0.0)
        o_ref[...] = y.astype(o_ref.dtype)


def _matmul_bn_act_1k_kernel(x_ref, w_ref, b_ref, *rest, relu, has_identity):
    # Single-K-step fast path: no accumulator scratch, result stays in vregs.
    if has_identity:
        id_ref, o_ref = rest
    else:
        (o_ref,) = rest
        id_ref = None
    y = jnp.dot(x_ref[...], w_ref[...],
                preferred_element_type=jnp.float32) + b_ref[...]
    if has_identity:
        y = y + id_ref[...].astype(jnp.float32)
    if relu:
        y = jnp.maximum(y, 0.0)
    o_ref[...] = y.astype(o_ref.dtype)


def _conv3x3_kernel(x_ref, w_ref, b_ref, o_ref, acc_ref, *, wp, cin, tm, relu):
    # Direct stride-1 3x3 conv.  grid = (cout_tiles, row_tiles).  x_ref is the
    # full zero-padded, row-flattened activation kept resident in VMEM; each of
    # the 9 taps reads a shifted row window (8-aligned dynamic start + static
    # intra-window slice) and does one MXU matmul against its (cin, tn) weight
    # slice, accumulating into an f32 VMEM scratch.
    i = pl.program_id(1)
    base = pl.multiple_of(i * tm, tm)
    for ki in range(3):
        big = x_ref[pl.ds(base + ki * wp, tm + 8), :]          # f32 (tm+8, cin)
        for kj in range(3):
            tap = ki * 3 + kj
            xt = big[kj:kj + tm, :].astype(jnp.bfloat16)
            wt = w_ref[tap * cin:(tap + 1) * cin, :]
            contrib = jnp.dot(xt, wt, preferred_element_type=jnp.float32)
            if tap == 0:
                acc_ref[...] = contrib
            else:
                acc_ref[...] += contrib
    y = acc_ref[...] + b_ref[...]
    if relu:
        y = jnp.maximum(y, 0.0)
    o_ref[...] = y.astype(o_ref.dtype)


def _maxpool3x3_kernel(x_ref, o_ref, *, wp, tm):
    # 3x3 max over shifted row windows of the (-inf)-padded flat activation,
    # computed at stride 1 (strided subsample happens in the wrapper).
    base = pl.multiple_of(pl.program_id(0) * tm, tm)
    r = None
    for ki in range(3):
        big = x_ref[pl.ds(base + ki * wp, tm + 8), :]
        for kj in range(3):
            v = big[kj:kj + tm, :]
            r = v if r is None else jnp.maximum(r, v)
    o_ref[...] = r.astype(o_ref.dtype)


def _avgpool_kernel(x_ref, o_ref, *, hw):
    # x block: (N, HW, tc) -> mean over HW.
    s = jnp.sum(x_ref[...].astype(jnp.float32), axis=1)
    o_ref[...] = s * (1.0 / hw)


# ---------------------------------------------------------------------------
# Pallas wrappers
# ---------------------------------------------------------------------------
@functools.partial(jax.jit, static_argnames=("relu", "cout"))
def matmul_bn_act(x, w, b, identity, *, relu, cout):
    """(M,K) @ pre-padded bf16 w:(Kp,Np) + bias (+ identity) -> (M,cout) bf16."""
    M, K = x.shape
    Kp, Np = w.shape
    tm = 256 if M >= 256 else _round_up(M, 8)
    Mp = _round_up(M, tm)
    tn = _pick_tn(Np)
    tk = _pick_tk(Kp)
    nk = Kp // tk

    xp = x.astype(jnp.bfloat16)
    if Mp != M or Kp != K:
        xp = jnp.pad(xp, ((0, Mp - M), (0, Kp - K)))

    has_id = identity is not None
    idp = None
    if has_id:
        idp = identity.astype(jnp.bfloat16)
        Mi, Ci = idp.shape
        if Mp != Mi or Np != Ci:
            idp = jnp.pad(idp, ((0, Mp - Mi), (0, Np - Ci)))

    if nk == 1:
        inputs = [xp, w, b]
        in_specs = [
            pl.BlockSpec((tm, Kp), lambda i, j: (i, 0)),
            pl.BlockSpec((Kp, tn), lambda i, j: (0, j)),
            pl.BlockSpec((1, tn), lambda i, j: (0, j)),
        ]
        if has_id:
            inputs.append(idp)
            in_specs.append(pl.BlockSpec((tm, tn), lambda i, j: (i, j)))
        out = pl.pallas_call(
            functools.partial(_matmul_bn_act_1k_kernel, relu=relu,
                              has_identity=has_id),
            out_shape=jax.ShapeDtypeStruct((Mp, Np), jnp.bfloat16),
            grid_spec=pltpu.PrefetchScalarGridSpec(
                num_scalar_prefetch=0,
                grid=(Mp // tm, Np // tn),
                in_specs=in_specs,
                out_specs=pl.BlockSpec((tm, tn), lambda i, j: (i, j)),
            ),
            compiler_params=pltpu.CompilerParams(
                dimension_semantics=("parallel", "parallel"),
                vmem_limit_bytes=_VMEM_LIMIT),
        )(*inputs)
        return out[:M, :cout]

    inputs = [xp, w, b]
    in_specs = [
        pl.BlockSpec((tm, tk), lambda i, j, k: (i, k)),
        pl.BlockSpec((tk, tn), lambda i, j, k: (k, j)),
        pl.BlockSpec((1, tn), lambda i, j, k: (0, j)),
    ]
    if has_id:
        inputs.append(idp)
        in_specs.append(pl.BlockSpec((tm, tn), lambda i, j, k: (i, j)))

    out = pl.pallas_call(
        functools.partial(_matmul_bn_act_kernel, relu=relu, has_identity=has_id),
        out_shape=jax.ShapeDtypeStruct((Mp, Np), jnp.bfloat16),
        grid_spec=pltpu.PrefetchScalarGridSpec(
            num_scalar_prefetch=0,
            grid=(Mp // tm, Np // tn, nk),
            in_specs=in_specs,
            out_specs=pl.BlockSpec((tm, tn), lambda i, j, k: (i, j)),
            scratch_shapes=[pltpu.VMEM((tm, tn), jnp.float32)],
        ),
        compiler_params=pltpu.CompilerParams(
            dimension_semantics=("parallel", "parallel", "arbitrary"),
            vmem_limit_bytes=_VMEM_LIMIT),
    )(*inputs)
    return out[:M, :cout]


@functools.partial(jax.jit, static_argnames=("cout",))
def conv3x3_bn_relu(x, w, b, *, cout):
    """Stride-1 'same' 3x3 conv + folded-BN bias + ReLU.  x: (N,H,W,C)."""
    N, H, W, C = x.shape
    _, Np = w.shape
    Hp = H + 2
    Wp = _round_up(W + 2, 8)        # pad width to 8 so all tap row-starts align
    rows = N * Hp * Wp
    tm = 256 if rows >= 256 else _round_up(rows, 8)
    Mp = _round_up(rows, tm)
    rows_in = Mp + 2 * Wp + 8
    tn = _pick_tn(Np)

    # TODO(synk): for very large N*H*W the resident activation should be row-
    # tiled instead of kept whole in VMEM; fine at these shapes.
    xpad = jnp.pad(x.astype(jnp.float32),
                   ((0, 0), (1, 1), (1, Wp - W - 1), (0, 0)))
    xflat = jnp.pad(xpad.reshape(rows, C), ((0, rows_in - rows), (0, 0)))

    out = pl.pallas_call(
        functools.partial(_conv3x3_kernel, wp=Wp, cin=C, tm=tm, relu=True),
        out_shape=jax.ShapeDtypeStruct((Mp, Np), jnp.bfloat16),
        grid_spec=pltpu.PrefetchScalarGridSpec(
            num_scalar_prefetch=0,
            grid=(Np // tn, Mp // tm),
            in_specs=[
                pl.BlockSpec((rows_in, C), lambda j, i: (0, 0)),   # resident
                pl.BlockSpec((9 * C, tn), lambda j, i: (0, j)),
                pl.BlockSpec((1, tn), lambda j, i: (0, j)),
            ],
            out_specs=pl.BlockSpec((tm, tn), lambda j, i: (i, j)),
            scratch_shapes=[pltpu.VMEM((tm, tn), jnp.float32)],
        ),
        compiler_params=pltpu.CompilerParams(
            dimension_semantics=("parallel", "parallel"),
            vmem_limit_bytes=_VMEM_LIMIT),
    )(xflat, w, b)
    # valid outputs live at window-start positions [:H, :W] of the padded grid
    return out[:rows, :cout].reshape(N, Hp, Wp, cout)[:, :H, :W, :]


@jax.jit
def maxpool_3x3_s2(x):
    """3x3/stride-2/pad-1 max pool.  x: (N,H,W,C) -> (N,Ho,Wo,C) bf16."""
    N, H, W, C = x.shape
    Ho = (H + 2 - 3) // 2 + 1
    Wo = (W + 2 - 3) // 2 + 1
    Hp = H + 2
    Wp = _round_up(W + 2, 8)
    rows = N * Hp * Wp
    tm = 256 if rows >= 256 else _round_up(rows, 8)
    Mp = _round_up(rows, tm)
    rows_in = Mp + 2 * Wp + 8

    xpad = jnp.pad(x.astype(jnp.float32),
                   ((0, 0), (1, 1), (1, Wp - W - 1), (0, 0)),
                   constant_values=-1e30)
    xflat = jnp.pad(xpad.reshape(rows, C), ((0, rows_in - rows), (0, 0)),
                    constant_values=-1e30)

    out = pl.pallas_call(
        functools.partial(_maxpool3x3_kernel, wp=Wp, tm=tm),
        out_shape=jax.ShapeDtypeStruct((Mp, C), jnp.bfloat16),
        grid_spec=pltpu.PrefetchScalarGridSpec(
            num_scalar_prefetch=0,
            grid=(Mp // tm,),
            in_specs=[pl.BlockSpec((rows_in, C), lambda i: (0, 0))],
            out_specs=pl.BlockSpec((tm, C), lambda i: (i, 0)),
        ),
        compiler_params=pltpu.CompilerParams(
            dimension_semantics=("parallel",),
            vmem_limit_bytes=_VMEM_LIMIT),
    )(xflat)
    full = out[:rows].reshape(N, Hp, Wp, C)
    return full[:, 0:2 * Ho:2, 0:2 * Wo:2, :]


@jax.jit
def avgpool_flatten(x):
    """Global average pool + flatten.  x: (N,H,W,C) -> (N,C) f32."""
    N, H, W, C = x.shape
    hw = H * W
    x3 = x.reshape(N, hw, C)
    tc = 256 if C % 256 == 0 else C
    return pl.pallas_call(
        functools.partial(_avgpool_kernel, hw=hw),
        out_shape=jax.ShapeDtypeStruct((N, C), jnp.float32),
        grid_spec=pltpu.PrefetchScalarGridSpec(
            num_scalar_prefetch=0,
            grid=(C // tc,),
            in_specs=[pl.BlockSpec((N, hw, tc), lambda j: (0, 0, j))],
            out_specs=pl.BlockSpec((N, tc), lambda j: (0, j)),
        ),
        compiler_params=pltpu.CompilerParams(
            dimension_semantics=("parallel",)),
    )(x3)


# ---------------------------------------------------------------------------
# im2col glue (only for the 7x7 stem and the 3 stride-2 3x3 convs)
# ---------------------------------------------------------------------------
def extract_patches(x, k, stride, pad):
    """x: (N,H,W,C) -> (N*Ho*Wo, k*k*C) im2col matrix (tap order ki,kj,C)."""
    N, H, W, C = x.shape
    xp = jnp.pad(x, ((0, 0), (pad, pad), (pad, pad), (0, 0)))
    Ho = (H + 2 * pad - k) // stride + 1
    Wo = (W + 2 * pad - k) // stride + 1
    cols = []
    for i in range(k):
        for j in range(k):
            cols.append(xp[:, i:i + stride * Ho:stride,
                           j:j + stride * Wo:stride, :])
    patches = jnp.stack(cols, axis=3)            # (N, Ho, Wo, k*k, C)
    return patches.reshape(N * Ho * Wo, k * k * C), Ho, Wo


def conv_bn_act(x, p, *, stride, ksize, pad, relu, identity=None):
    """1x1 conv, or im2col conv (7x7 stem / stride-2 3x3) + BN + opt. ReLU."""
    N, H, W, C = x.shape
    cout = p["cout"]
    if ksize == 1:
        xs = x[:, ::stride, ::stride, :] if stride > 1 else x
        Ho, Wo = xs.shape[1], xs.shape[2]
        cols = xs.reshape(N * Ho * Wo, C)
    else:
        # TODO(synk): the 3 stride-2 3x3 convs (+ 7x7 stem) still use im2col;
        # all stride-1 3x3 convs go through the direct no-materialization kernel.
        cols, Ho, Wo = extract_patches(x, ksize, stride, pad)
    id2d = None
    if identity is not None:
        id2d = identity.reshape(N * Ho * Wo, cout)
    out2d = matmul_bn_act(cols, p["w"], p["bias"], id2d, relu=relu, cout=cout)
    return out2d.reshape(N, Ho, Wo, cout)


# ---------------------------------------------------------------------------
# ResNet-101 structure (deterministic synthetic weights, BN scale folded in)
# ---------------------------------------------------------------------------
def _init_bn(key, c, eps=1e-5):
    k1, k2, k3, k4 = jax.random.split(key, 4)
    gamma = 1.0 + 0.1 * jax.random.normal(k1, (c,), jnp.float32)
    beta = 0.1 * jax.random.normal(k2, (c,), jnp.float32)
    mean = 0.1 * jax.random.normal(k3, (c,), jnp.float32)
    var = 1.0 + 0.1 * jax.random.uniform(k4, (c,), jnp.float32)
    scale = gamma / jnp.sqrt(var + eps)
    bias = beta - mean * scale
    return scale, bias


def _init_conv_bn(key, k, cin, cout, *, direct=False):
    kw, kb = jax.random.split(key)
    fan_in = k * k * cin
    w = jax.random.normal(kw, (fan_in, cout), jnp.float32) * np.sqrt(2.0 / fan_in)
    scale, bias = _init_bn(kb, cout)
    w = w * scale[None, :]                      # fold BN scale into the weights
    np_ = _round_up(cout, 128)
    kp = fan_in if direct else _round_up(fan_in, 128)
    wp = jnp.zeros((kp, np_), jnp.float32).at[:fan_in, :cout].set(w)
    bp = jnp.zeros((1, np_), jnp.float32).at[0, :cout].set(bias)
    return {"w": wp.astype(jnp.bfloat16), "bias": bp, "cout": cout}


def _init_bottleneck(key, cin, width, stride, downsample):
    keys = jax.random.split(key, 4)
    p = {
        "conv1": _init_conv_bn(keys[0], 1, cin, width),
        "conv2": _init_conv_bn(keys[1], 3, width, width, direct=(stride == 1)),
        "conv3": _init_conv_bn(keys[2], 1, width, width * 4),
        "stride": stride,
    }
    if downsample:
        p["downsample"] = _init_conv_bn(keys[3], 1, cin, width * 4)
    return p


def init_resnet101(key):
    params = {"conv1": _init_conv_bn(jax.random.fold_in(key, 0), 7, 3, 64)}
    cfg = [(3, 64, 1), (4, 128, 2), (23, 256, 2), (3, 512, 2)]   # ResNet-101
    layers = []
    cin = 64
    idx = 1
    for nblocks, width, stride in cfg:
        layer = []
        for b in range(nblocks):
            s = stride if b == 0 else 1
            layer.append(_init_bottleneck(jax.random.fold_in(key, idx),
                                          cin, width, s, downsample=(b == 0)))
            cin = width * 4
            idx += 1
        layers.append(layer)
    params["layers"] = layers
    return params


def bottleneck_forward(x, p):
    stride = p["stride"]
    out = conv_bn_act(x, p["conv1"], stride=1, ksize=1, pad=0, relu=True)
    if stride == 1:
        c2 = p["conv2"]
        out = conv3x3_bn_relu(out, c2["w"], c2["bias"], cout=c2["cout"])
    else:
        out = conv_bn_act(out, p["conv2"], stride=stride, ksize=3, pad=1,
                          relu=True)
    if "downsample" in p:
        identity = conv_bn_act(x, p["downsample"], stride=stride, ksize=1,
                               pad=0, relu=False)
    else:
        identity = x
    # conv3 with the residual add + ReLU fused into the matmul epilogue
    return conv_bn_act(out, p["conv3"], stride=1, ksize=1, pad=0, relu=True,
                       identity=identity)


def resbase101_forward(x_nchw, params):
    # conv1 -> bn1 -> relu -> maxpool -> layer1..4 -> avgpool -> flatten
    x = jnp.transpose(x_nchw, (0, 2, 3, 1)).astype(jnp.bfloat16)  # NCHW -> NHWC
    x = conv_bn_act(x, params["conv1"], stride=2, ksize=7, pad=3, relu=True)
    x = maxpool_3x3_s2(x)
    for layer in params["layers"]:
        for blk in layer:
            x = bottleneck_forward(x, blk)
    return avgpool_flatten(x)    # (N, 2048)


if __name__ == "__main__":
    key = jax.random.PRNGKey(0)
    pkey, xkey = jax.random.split(key)
    params = init_resnet101(pkey)
    # small but stride-compatible input: (N=2, C=3, H=64, W=64)
    x = jax.random.normal(xkey, (2, 3, 64, 64), jnp.float32)
    out = resbase101_forward(x, params)
    out = jax.block_until_ready(out)
    assert out.shape == (2, 2048), out.shape
    assert bool(jnp.all(jnp.isfinite(out)))
    print("KERNEL_OK")
</pallas_src>

<mosaic_0001>
module attributes {stable_mosaic.version = 11 : i64} {
  func.func @_matmul_bn_act_1k_kernel(%arg0: i32, %arg1: i32, %arg2: memref<256x256xbf16, #tpu.memory_space<vmem>>, %arg3: memref<256x128xbf16, #tpu.memory_space<vmem>>, %arg4: memref<1x128xf32, #tpu.memory_space<vmem>>, %arg5: memref<256x128xbf16, #tpu.memory_space<vmem>>) attributes {dimension_semantics = [#tpu.dimension_semantics<parallel>, #tpu.dimension_semantics<parallel>], iteration_bounds = array<i64: 8, 1>, scalar_prefetch = 0 : i64, scratch_operands = 0 : i64, tpu.core_type = #tpu.core_type<tc>, window_params = [{transform_indices = @transform_0, window_bounds = array<i64: 256, 256>}, {transform_indices = @transform_1, window_bounds = array<i64: 256, 128>}, {transform_indices = @transform_2, window_bounds = array<i64: 1, 128>}, {transform_indices = @transform_3, window_bounds = array<i64: 256, 128>}]} {
    %c0 = arith.constant 0 : index
    %c0_0 = arith.constant 0 : index
    %0 = vector.load %arg2[%c0, %c0_0] : memref<256x256xbf16, #tpu.memory_space<vmem>>, vector<256x256xbf16>
    %c0_1 = arith.constant 0 : index
    %c0_2 = arith.constant 0 : index
    %1 = vector.load %arg3[%c0_1, %c0_2] : memref<256x128xbf16, #tpu.memory_space<vmem>>, vector<256x128xbf16>
    %cst = arith.constant dense<0.000000e+00> : vector<256x128xf32>
    %2 = tpu.matmul %0, %1, %cst {dimension_numbers = #tpu.dot_dimension_numbers<[1], [0], [0], [1], [0, 0, 1, 1], [], []>} : vector<256x256xbf16>, vector<256x128xbf16>, vector<256x128xf32> -> vector<256x128xf32>
    %c0_3 = arith.constant 0 : index
    %c0_4 = arith.constant 0 : index
    %3 = vector.load %arg4[%c0_3, %c0_4] : memref<1x128xf32, #tpu.memory_space<vmem>>, vector<1x128xf32>
    %4 = vector.broadcast %3 : vector<1x128xf32> to vector<256x128xf32>
    %5 = arith.addf %2, %4 : vector<256x128xf32>
    %cst_5 = arith.constant 0.000000e+00 : f32
    %6 = vector.broadcast %cst_5 : f32 to vector<256x128xf32>
    %7 = arith.maximumf %5, %6 : vector<256x128xf32>
    %8 = arith.truncf %7 : vector<256x128xf32> to vector<256x128xbf16>
    %c0_6 = arith.constant 0 : index
    %c0_7 = arith.constant 0 : index
    %9 = vector.load %arg5[%c0_6, %c0_7] : memref<256x128xbf16, #tpu.memory_space<vmem>>, vector<256x128xbf16>
    tpu.vector_store %arg5[%c0_6, %c0_7], %8 {strides = array<i32>} : memref<256x128xbf16, #tpu.memory_space<vmem>>, vector<256x128xbf16>,
    return
  }
  func.func @transform_0(%arg0: i32, %arg1: i32) -> (i32, i32) {
    %c0_i32 = arith.constant 0 : i32
    %c0_i32_0 = arith.constant 0 : i32
    return %arg0, %c0_i32 : i32, i32
  }
  func.func @transform_1(%arg0: i32, %arg1: i32) -> (i32, i32) {
    %c0_i32 = arith.constant 0 : i32
    %c0_i32_0 = arith.constant 0 : i32
    return %c0_i32, %arg1 : i32, i32
  }
  func.func @transform_2(%arg0: i32, %arg1: i32) -> (i32, i32) {
    %c0_i32 = arith.constant 0 : i32
    %c0_i32_0 = arith.constant 0 : i32
    return %c0_i32, %arg1 : i32, i32
  }
  func.func @transform_3(%arg0: i32, %arg1: i32) -> (i32, i32) {
    %c0_i32 = arith.constant 0 : i32
    return %arg0, %arg1 : i32, i32
  }
}

</mosaic_0001>

<llo_original>
// kernel: matmul_bn_act.1
$region0: #{matmul_bn_act.1}
  #allocation0 [shape = 'u32[]', space=smem, size = 0x4, offset = 0x4, fixed_abs, tag = 'smem constant byte address 0x4 - core index']
  #allocation1 [shape = 'u32[144,128]{1,0:T(1,128)}', space=vmem, size = 0x12000, scoped, tag = 'internal scratch']
  %s0 = inlined_call_operand.vmem [shape: bf16[2048,256], index: 0, kind: input, shape index: {}]
  %s1 = inlined_call_operand.vmem [shape: bf16[256,128], index: 1, kind: input, shape index: {}]
  %s2 = inlined_call_operand.vmem [shape: f32[1,128], index: 2, kind: input, shape index: {}]
  %s3 = inlined_call_operand.vmem [shape: bf16[2048,128], index: 3, kind: output, shape index: {}]
  %s4 = sld [smem:[#allocation0]]
  $region45: #{matmul_bn_act.1} parent=0
    _
  %s6 = ssub.s32 1, %s4
  %s7 = scalar_select 0, %s6, %s4
  loop: start=0, step=1, limit=10
  $region2: #{matmul_bn_act.1} parent=0 // loop_pre_header
    _
  $region3: #{matmul_bn_act.1} parent=0 // loop_header
    %s9 = sphi 0, %s13
    %p10 = scmp.ge.s32.totalorder %s9, 10
    %s16 = sphi 0, %s28
    %s17 = sphi 0, %s24
    %s18 = sphi 0, %s16
    %s19 = sphi 0, %s17
    %s20 = sphi 0, %s18
    %s21 = sphi 0, %s19
    %s31 = sphi 0, %s33
    %s34 = sphi 0, %s31
    %s35 = sphi 0, %s34
    %s51 = sphi 0, %s35
    %s57 = sphi 0, %s59
    %s60 = sphi 0, %s57
    %s61 = sphi 0, %s60
    %s77 = sphi 0, %s61
    %s83 = sphi 0, %s85
    %s86 = sphi 0, %s83
    %s87 = sphi 0, %s86
    %s103 = sphi 0, %s87
    %s111 = sphi 0, %s113
    %s114 = sphi 0, %s111
    %s115 = sphi 0, %s114
    %s131 = sphi 0, %s115
  $region4: #{matmul_bn_act.1} parent=0 // loop_header_branch
    %12 = sbr.rel (%p10) target = $region8
  $region5: #{matmul_bn_act.1} parent=0 // loop_body
    %s14 = ssub.s32 %s9, 1
    %s15 = ssub.s32 %s9, 2
    %s22 = sadd.s32 1, %s17
    %p23 = scmp.ge.s32.totalorder %s22, 1
    %s24 = scalar_select %p23, 0, %s22
    %s25 = sadd.s32 1, %s16
    %s26 = scalar_select %p23, %s25, %s16
    %p27 = scmp.ge.s32.totalorder %s26, 8
    %s28 = scalar_select %p27, 0, %s26
    %s29 = ssub.s32 %s16, %s28
    %p30 = scmp.eq.s32.totalorder %s29, 0
    %s32 = sadd.s32 %s31, 1
    %s33 = scalar_select %p30, %s31, %s32
    %p36 = pneg %p30
    %p37 = scmp.eq.s32.totalorder %s9, 7
    %p38 = por %p36, %p37
    %p39 = scmp.ne.s32.totalorder %s31, %s34
    %p40 = scmp.eq.s32.totalorder %s9, 0
    %p41 = por %p39, %p40
    %p42 = scmp.ne.s32.totalorder %s31, %s34
    %p43 = scmp.eq.s32.totalorder %s14, 7
    %p44 = por %p42, %p43
    %p45 = scmp.ne.s32.totalorder %s34, %s35
    %p46 = scmp.eq.s32.totalorder %s14, 0
    %p47 = por %p45, %p46
    %p48 = scmp.ne.s32.totalorder %s34, %s35
    %p49 = scmp.eq.s32.totalorder %s15, 7
    %p50 = por %p48, %p49
    %p52 = scmp.ne.s32.totalorder %s35, %s51
    %p53 = scmp.eq.s32.totalorder %s15, 0
    %p54 = por %p52, %p53
    %s55 = ssub.s32 %s17, %s24
    %p56 = scmp.eq.s32.totalorder %s55, 0
    %s58 = sadd.s32 %s57, 1
    %s59 = scalar_select %p56, %s57, %s58
    %p62 = pneg %p56
    %p63 = scmp.eq.s32.totalorder %s9, 7
    %p64 = por %p62, %p63
    %p65 = scmp.ne.s32.totalorder %s57, %s60
    %p66 = scmp.eq.s32.totalorder %s9, 0
    %p67 = por %p65, %p66
    %p68 = scmp.ne.s32.totalorder %s57, %s60
    %p69 = scmp.eq.s32.totalorder %s14, 7
    %p70 = por %p68, %p69
    %p71 = scmp.ne.s32.totalorder %s60, %s61
    %p72 = scmp.eq.s32.totalorder %s14, 0
    %p73 = por %p71, %p72
    %p74 = scmp.ne.s32.totalorder %s60, %s61
    %p75 = scmp.eq.s32.totalorder %s15, 7
    %p76 = por %p74, %p75
    %p78 = scmp.ne.s32.totalorder %s61, %s77
    %p79 = scmp.eq.s32.totalorder %s15, 0
    %p80 = por %p78, %p79
    %s81 = ssub.s32 %s17, %s24
    %p82 = scmp.eq.s32.totalorder %s81, 0
    %s84 = sadd.s32 %s83, 1
    %s85 = scalar_select %p82, %s83, %s84
    %p88 = pneg %p82
    %p89 = scmp.eq.s32.totalorder %s9, 7
    %p90 = por %p88, %p89
    %p91 = scmp.ne.s32.totalorder %s83, %s86
    %p92 = scmp.eq.s32.totalorder %s9, 0
    %p93 = por %p91, %p92
    %p94 = scmp.ne.s32.totalorder %s83, %s86
    %p95 = scmp.eq.s32.totalorder %s14, 7
    %p96 = por %p94, %p95
    %p97 = scmp.ne.s32.totalorder %s86, %s87
    %p98 = scmp.eq.s32.totalorder %s14, 0
    %p99 = por %p97, %p98
    %p100 = scmp.ne.s32.totalorder %s86, %s87
    %p101 = scmp.eq.s32.totalorder %s15, 7
    %p102 = por %p100, %p101
    %p104 = scmp.ne.s32.totalorder %s87, %s103
    %p105 = scmp.eq.s32.totalorder %s15, 0
    %p106 = por %p104, %p105
    %s107 = ssub.s32 %s16, %s28
    %s108 = ssub.s32 %s17, %s24
    %s109 = sor.u32 %s107, %s108
    %p110 = scmp.eq.s32.totalorder %s109, 0
    %s112 = sadd.s32 %s111, 1
    %s113 = scalar_select %p110, %s111, %s112
    %p116 = pneg %p110
    %p117 = scmp.eq.s32.totalorder %s9, 7
    %p118 = por %p116, %p117
    %p119 = scmp.ne.s32.totalorder %s111, %s114
    %p120 = scmp.eq.s32.totalorder %s9, 0
    %p121 = por %p119, %p120
    %p122 = scmp.ne.s32.totalorder %s111, %s114
    %p123 = scmp.eq.s32.totalorder %s14, 7
    %p124 = por %p122, %p123
    %p125 = scmp.ne.s32.totalorder %s114, %s115
    %p126 = scmp.eq.s32.totalorder %s14, 0
    %p127 = por %p125, %p126
    %p128 = scmp.ne.s32.totalorder %s114, %s115
    %p129 = scmp.eq.s32.totalorder %s15, 7
    %p130 = por %p128, %p129
    %p132 = scmp.ne.s32.totalorder %s115, %s131
    %p133 = scmp.eq.s32.totalorder %s15, 0
    %p134 = por %p132, %p133
    %p135 = scmp.le.s32.totalorder 1, %s9
    %p136 = scmp.lt.s32.totalorder %s9, 9
    %p137 = pnand %p135, %p136
    %p138 = pneg %p137
    // Predicated region
    $region9: #{matmul_bn_act.1} parent=5 // pred_check
      _
    $region10: #{matmul_bn_act.1} parent=5 // pred_check_branch
      %140 = sbr.rel (%p137) target = $region12
    $region11: #{matmul_bn_act.1} parent=5 // pred_region
      %s141 = ssub.s32 %s9, 1
      // Predicated region
      $region13: #{matmul_bn_act.1} parent=11 // pred_check
        %p142 = pneg %p73
      $region14: #{matmul_bn_act.1} parent=11 // pred_check_branch
        %144 = sbr.rel (%p142) target = $region16
      $region15: #{matmul_bn_act.1} parent=11 // pred_region
        %p145 = scmp.lt.s32.totalorder %s19, 0
        %s146 = scalar_select %p145, %s19, 0
        %s147 = smul.addr %s146, 4
        %s148 = scalar_lea.vmem %s1, %s147
      $region16: #{matmul_bn_act.1} parent=11 // pred_fallthru
        _
      // Predicated region
      $region17: #{matmul_bn_act.1} parent=11 // pred_check
        %p149 = pneg %p99
      $region18: #{matmul_bn_act.1} parent=11 // pred_check_branch
        %151 = sbr.rel (%p149) target = $region20
      $region19: #{matmul_bn_act.1} parent=11 // pred_region
        %p152 = scmp.lt.s32.totalorder %s19, 0
        %s153 = scalar_select %p152, %s19, 0
        %s154 = scalar_lea.vmem %s2, %s153
      $region20: #{matmul_bn_act.1} parent=11 // pred_fallthru
        _
    $region12: #{matmul_bn_act.1} parent=5 // pred_fallthru
      _
    %p155 = scmp.lt.s32.totalorder %s9, 8
    // Predicated region
    $region21: #{matmul_bn_act.1} parent=5 // pred_check
      %p156 = pneg %p155
    $region22: #{matmul_bn_act.1} parent=5 // pred_check_branch
      %158 = sbr.rel (%p156) target = $region24
    $region23: #{matmul_bn_act.1} parent=5 // pred_region
      // Predicated region
      $region25: #{matmul_bn_act.1} parent=23 // pred_check
        %p159 = pneg %p41
      $region26: #{matmul_bn_act.1} parent=23 // pred_check_branch
        %161 = sbr.rel (%p159) target = $region28
      $region27: #{matmul_bn_act.1} parent=23 // pred_region
        %s162 = smul.u32 32, %s16
        %p163 = scmp.lt.s32.totalorder %s162, 255
        %s164 = scalar_select %p163, %s162, 255
        %s165 = smul.addr %s164, 2
        %s166 = smul.addr %s165, 4
        %s167 = scalar_lea.vmem %s0, %s166
        %s168 = smul.u32 32, %s16
      $region28: #{matmul_bn_act.1} parent=23 // pred_fallthru
        _
    $region24: #{matmul_bn_act.1} parent=5 // pred_fallthru
      _
    %p169 = scmp.le.s32.totalorder 1, %s9
    %p170 = scmp.lt.s32.totalorder %s9, 9
    %p171 = pnand %p169, %p170
    %p172 = pneg %p171
    // Predicated region
    $region29: #{matmul_bn_act.1} parent=5 // pred_check
      _
    $region30: #{matmul_bn_act.1} parent=5 // pred_check_branch
      %174 = sbr.rel (%p171) target = $region32
    $region31: #{matmul_bn_act.1} parent=5 // pred_region
      %s175 = ssub.s32 %s9, 1
      %s176 = smul.u32 32, %s18
      %p177 = scmp.lt.s32.totalorder %s176, 255
      %s178 = scalar_select %p177, %s176, 255
      %s179 = smul.addr %s178, 2
      %s180 = smul.addr %s179, 4
      %s181 = scalar_lea.vmem %s0, %s180
      %p182 = pneg %p47
      %p183 = pneg %p44
      %p184 = scmp.lt.s32.totalorder %s19, 0
      %s185 = scalar_select %p184, %s19, 0
      %s186 = smul.addr %s185, 4
      %s187 = scalar_lea.vmem %s1, %s186
      %p188 = pneg %p73
      %p189 = pneg %p70
      %p190 = scmp.lt.s32.totalorder %s19, 0
      %s191 = scalar_select %p190, %s19, 0
      %s192 = scalar_lea.vmem %s2, %s191
      %p193 = pneg %p99
      %p194 = pneg %p96
      %p195 = pneg %p127
      %p196 = pneg %p124
      %s197 = smul.u32 32, %s18
      %p198 = scmp.lt.s32.totalorder %s197, 255
      %s199 = scalar_select %p198, %s197, 255
      %p200 = scmp.lt.s32.totalorder %s19, 0
      %s201 = scalar_select %p200, %s19, 0
      %s202 = sadd.s32 %s201, %s199
      %s203 = smul.addr %s202, 4
      %s204 = scalar_lea.vmem %s3, %s203
      %s205 = smul.u32 32, %s18
      %p206 = scmp.lt.s32.totalorder %s205, 255
      %s207 = scalar_select %p206, %s205, 255
      %s208 = smul.addr %s207, 2
      %s209 = smul.addr %s208, 4
      %s210 = scalar_lea.vmem %s0, %s209
      %s211 = smul.u32 32, %s18
      %p212 = scmp.lt.s32.totalorder %s19, 0
      %s213 = scalar_select %p212, %s19, 0
      %s214 = smul.addr %s213, 4
      %s215 = scalar_lea.vmem %s1, %s214
      %p216 = scmp.lt.s32.totalorder %s19, 0
      %s217 = scalar_select %p216, %s19, 0
      %s218 = scalar_lea.vmem %s2, %s217
      %s219 = smul.u32 32, %s18
      %p220 = scmp.lt.s32.totalorder %s219, 255
      %s221 = scalar_select %p220, %s219, 255
      %p222 = scmp.lt.s32.totalorder %s19, 0
      %s223 = scalar_select %p222, %s19, 0
      %s224 = sadd.s32 %s223, %s221
      %s225 = smul.addr %s224, 4
      %s226 = scalar_lea.vmem %s3, %s225
      %s227 = smul.u32 32, %s18
      %v229 = vld [vmem:[%s210] sm:$0xff]
      %v230 = vld [vmem:[%s210 + $0x8] sm:$0xff]
      %v231 = vld [vmem:[%s210 + $0x10] sm:$0xff]
      %v232 = vld [vmem:[%s210 + $0x18] sm:$0xff]
      %v233 = vld [vmem:[%s210 + $0x20] sm:$0xff]
      %v234 = vld [vmem:[%s210 + $0x28] sm:$0xff]
      %v235 = vld [vmem:[%s210 + $0x30] sm:$0xff]
      %v236 = vld [vmem:[%s210 + $0x38] sm:$0xff]
      %v237 = vld [vmem:[%s210 + $0x40] sm:$0xff]
      %v238 = vld [vmem:[%s210 + $0x48] sm:$0xff]
      %v239 = vld [vmem:[%s210 + $0x50] sm:$0xff]
      %v240 = vld [vmem:[%s210 + $0x58] sm:$0xff]
      %v241 = vld [vmem:[%s210 + $0x60] sm:$0xff]
      %v242 = vld [vmem:[%s210 + $0x68] sm:$0xff]
      %v243 = vld [vmem:[%s210 + $0x70] sm:$0xff]
      %v244 = vld [vmem:[%s210 + $0x78] sm:$0xff]
      %v245 = vld [vmem:[%s210 + $0x80] sm:$0xff]
      %v246 = vld [vmem:[%s210 + $0x88] sm:$0xff]
      %v247 = vld [vmem:[%s210 + $0x90] sm:$0xff]
      %v248 = vld [vmem:[%s210 + $0x98] sm:$0xff]
      %v249 = vld [vmem:[%s210 + $0xa0] sm:$0xff]
      %v250 = vld [vmem:[%s210 + $0xa8] sm:$0xff]
      %v251 = vld [vmem:[%s210 + $0xb0] sm:$0xff]
      %v252 = vld [vmem:[%s210 + $0xb8] sm:$0xff]
      %v253 = vld [vmem:[%s210 + $0xc0] sm:$0xff]
      %v254 = vld [vmem:[%s210 + $0xc8] sm:$0xff]
      %v255 = vld [vmem:[%s210 + $0xd0] sm:$0xff]
      %v256 = vld [vmem:[%s210 + $0xd8] sm:$0xff]
      %v257 = vld [vmem:[%s210 + $0xe0] sm:$0xff]
      %v258 = vld [vmem:[%s210 + $0xe8] sm:$0xff]
      %v259 = vld [vmem:[%s210 + $0xf0] sm:$0xff]
      %v260 = vld [vmem:[%s210 + $0xf8] sm:$0xff]
      %v261 = vld [vmem:[%s215] sm:$0xf]
      %v262 = vld [vmem:[%s215 + $0x4] sm:$0xf]
      %v263 = vld [vmem:[%s215 + $0x8] sm:$0xf]
      %v264 = vld [vmem:[%s215 + $0xc] sm:$0xf]
      %v265 = vld [vmem:[%s215 + $0x10] sm:$0xf]
      %v266 = vld [vmem:[%s215 + $0x14] sm:$0xf]
      %v267 = vld [vmem:[%s215 + $0x18] sm:$0xf]
      %v268 = vld [vmem:[%s215 + $0x1c] sm:$0xf]
      %v269 = vld [vmem:[%s215 + $0x20] sm:$0xf]
      %v270 = vld [vmem:[%s215 + $0x24] sm:$0xf]
      %v271 = vld [vmem:[%s215 + $0x28] sm:$0xf]
      %v272 = vld [vmem:[%s215 + $0x2c] sm:$0xf]
      %v273 = vld [vmem:[%s215 + $0x30] sm:$0xf]
      %v274 = vld [vmem:[%s215 + $0x34] sm:$0xf]
      %v275 = vld [vmem:[%s215 + $0x38] sm:$0xf]
      %v276 = vld [vmem:[%s215 + $0x3c] sm:$0xf]
      %v277 = vld [vmem:[%s215 + $0x40] sm:$0xf]
      %v278 = vld [vmem:[%s215 + $0x44] sm:$0xf]
      %v279 = vld [vmem:[%s215 + $0x48] sm:$0xf]
      %v280 = vld [vmem:[%s215 + $0x4c] sm:$0xf]
      %v281 = vld [vmem:[%s215 + $0x50] sm:$0xf]
      %v282 = vld [vmem:[%s215 + $0x54] sm:$0xf]
      %v283 = vld [vmem:[%s215 + $0x58] sm:$0xf]
      %v284 = vld [vmem:[%s215 + $0x5c] sm:$0xf]
      %v285 = vld [vmem:[%s215 + $0x60] sm:$0xf]
      %v286 = vld [vmem:[%s215 + $0x64] sm:$0xf]
      %v287 = vld [vmem:[%s215 + $0x68] sm:$0xf]
      %v288 = vld [vmem:[%s215 + $0x6c] sm:$0xf]
      %v289 = vld [vmem:[%s215 + $0x70] sm:$0xf]
      %v290 = vld [vmem:[%s215 + $0x74] sm:$0xf]
      %v291 = vld [vmem:[%s215 + $0x78] sm:$0xf]
      %v292 = vld [vmem:[%s215 + $0x7c] sm:$0xf]
      %v293 = vld [vmem:[%s218] sm:$0x1]
      %v295 = vlaneseq
      %v296 = vshrl.u32 %v295, 7
      %v297 = vsub.s32 0, %v296
      %v298 = vrot.slane %v293, %v297
      %v332 = vunpack.c.l.b16 %v229
      %v333 = vunpack.c.h.b16 %v229
      %v334 = vunpack.c.l.b16 %v230
      %v335 = vunpack.c.h.b16 %v230
      %v336 = vunpack.c.l.b16 %v231
      %v337 = vunpack.c.h.b16 %v231
      %v338 = vunpack.c.l.b16 %v232
      %v339 = vunpack.c.h.b16 %v232
      %v340 = vunpack.c.l.b16 %v233
      %v341 = vunpack.c.h.b16 %v233
      %v342 = vunpack.c.l.b16 %v234
      %v343 = vunpack.c.h.b16 %v234
      %v344 = vunpack.c.l.b16 %v235
      %v345 = vunpack.c.h.b16 %v235
      %v346 = vunpack.c.l.b16 %v236
      %v347 = vunpack.c.h.b16 %v236
      %v348 = vunpack.c.l.b16 %v237
      %v349 = vunpack.c.h.b16 %v237
      %v350 = vunpack.c.l.b16 %v238
      %v351 = vunpack.c.h.b16 %v238
      %v352 = vunpack.c.l.b16 %v239
      %v353 = vunpack.c.h.b16 %v239
      %v354 = vunpack.c.l.b16 %v240
      %v355 = vunpack.c.h.b16 %v240
      %v356 = vunpack.c.l.b16 %v241
      %v357 = vunpack.c.h.b16 %v241
      %v358 = vunpack.c.l.b16 %v242
      %v359 = vunpack.c.h.b16 %v242
      %v360 = vunpack.c.l.b16 %v243
      %v361 = vunpack.c.h.b16 %v243
      %v362 = vunpack.c.l.b16 %v244
      %v363 = vunpack.c.h.b16 %v244
      %v364 = vunpack.c.l.b16 %v245
      %v365 = vunpack.c.h.b16 %v245
      %v366 = vunpack.c.l.b16 %v246
      %v367 = vunpack.c.h.b16 %v246
      %v368 = vunpack.c.l.b16 %v247
      %v369 = vunpack.c.h.b16 %v247
      %v370 = vunpack.c.l.b16 %v248
      %v371 = vunpack.c.h.b16 %v248
      %v372 = vunpack.c.l.b16 %v249
      %v373 = vunpack.c.h.b16 %v249
      %v374 = vunpack.c.l.b16 %v250
      %v375 = vunpack.c.h.b16 %v250
      %v376 = vunpack.c.l.b16 %v251
      %v377 = vunpack.c.h.b16 %v251
      %v378 = vunpack.c.l.b16 %v252
      %v379 = vunpack.c.h.b16 %v252
      %v380 = vunpack.c.l.b16 %v253
      %v381 = vunpack.c.h.b16 %v253
      %v382 = vunpack.c.l.b16 %v254
      %v383 = vunpack.c.h.b16 %v254
      %v384 = vunpack.c.l.b16 %v255
      %v385 = vunpack.c.h.b16 %v255
      %v386 = vunpack.c.l.b16 %v256
      %v387 = vunpack.c.h.b16 %v256
      %v388 = vunpack.c.l.b16 %v257
      %v389 = vunpack.c.h.b16 %v257
      %v390 = vunpack.c.l.b16 %v258
      %v391 = vunpack.c.h.b16 %v258
      %v392 = vunpack.c.l.b16 %v259
      %v393 = vunpack.c.h.b16 %v259
      %v394 = vunpack.c.l.b16 %v260
      %v395 = vunpack.c.h.b16 %v260
      %v396 = vpack.c.b16 %v334, %v332
      %v397 = vpack.c.b16 %v335, %v333
      %v398 = vpack.c.b16 %v338, %v336
      %v399 = vpack.c.b16 %v339, %v337
      %v400 = vpack.c.b16 %v342, %v340
      %v401 = vpack.c.b16 %v343, %v341
      %v402 = vpack.c.b16 %v346, %v344
      %v403 = vpack.c.b16 %v347, %v345
      %v404 = vpack.c.b16 %v350, %v348
      %v405 = vpack.c.b16 %v351, %v349
      %v406 = vpack.c.b16 %v354, %v352
      %v407 = vpack.c.b16 %v355, %v353
      %v408 = vpack.c.b16 %v358, %v356
      %v409 = vpack.c.b16 %v359, %v357
      %v410 = vpack.c.b16 %v362, %v360
      %v411 = vpack.c.b16 %v363, %v361
      %v412 = vpack.c.b16 %v366, %v364
      %v413 = vpack.c.b16 %v367, %v365
      %v414 = vpack.c.b16 %v370, %v368
      %v415 = vpack.c.b16 %v371, %v369
      %v416 = vpack.c.b16 %v374, %v372
      %v417 = vpack.c.b16 %v375, %v373
      %v418 = vpack.c.b16 %v378, %v376
      %v419 = vpack.c.b16 %v379, %v377
      %v420 = vpack.c.b16 %v382, %v380
      %v421 = vpack.c.b16 %v383, %v381
      %v422 = vpack.c.b16 %v386, %v384
      %v423 = vpack.c.b16 %v387, %v385
      %v424 = vpack.c.b16 %v390, %v388
      %v425 = vpack.c.b16 %v391, %v389
      %v426 = vpack.c.b16 %v394, %v392
      %v427 = vpack.c.b16 %v395, %v393
      %v492 = vunpack.c.l.b16 %v261
      %v493 = vunpack.c.l.b16 %v262
      %v494 = vunpack.c.l.b16 %v263
      %v495 = vunpack.c.l.b16 %v264
      %v496 = vunpack.c.l.b16 %v265
      %v497 = vunpack.c.l.b16 %v266
      %v498 = vunpack.c.l.b16 %v267
      %v499 = vunpack.c.l.b16 %v268
      %v500 = vunpack.c.l.b16 %v269
      %v501 = vunpack.c.l.b16 %v270
      %v502 = vunpack.c.l.b16 %v271
      %v503 = vunpack.c.l.b16 %v272
      %v504 = vunpack.c.l.b16 %v273
      %v505 = vunpack.c.l.b16 %v274
      %v506 = vunpack.c.l.b16 %v275
      %v507 = vunpack.c.l.b16 %v276
      %v508 = vunpack.c.l.b16 %v277
      %v509 = vunpack.c.l.b16 %v278
      %v510 = vunpack.c.l.b16 %v279
      %v511 = vunpack.c.l.b16 %v280
      %v512 = vunpack.c.l.b16 %v281
      %v513 = vunpack.c.l.b16 %v282
      %v514 = vunpack.c.l.b16 %v283
      %v515 = vunpack.c.l.b16 %v284
      %v516 = vunpack.c.l.b16 %v285
      %v517 = vunpack.c.l.b16 %v286
      %v518 = vunpack.c.l.b16 %v287
      %v519 = vunpack.c.l.b16 %v288
      %v520 = vunpack.c.l.b16 %v289
      %v521 = vunpack.c.l.b16 %v290
      %v522 = vunpack.c.l.b16 %v291
      %v523 = vunpack.c.l.b16 %v292
      %v524 = vpack.c.b16 %v493, %v492
      %v525 = vpack.c.b16 %v495, %v494
      %v526 = vpack.c.b16 %v497, %v496
      %v527 = vpack.c.b16 %v499, %v498
      %v528 = vpack.c.b16 %v501, %v500
      %v529 = vpack.c.b16 %v503, %v502
      %v530 = vpack.c.b16 %v505, %v504
      %v531 = vpack.c.b16 %v507, %v506
      %v532 = vpack.c.b16 %v509, %v508
      %v533 = vpack.c.b16 %v511, %v510
      %v534 = vpack.c.b16 %v513, %v512
      %v535 = vpack.c.b16 %v515, %v514
      %v536 = vpack.c.b16 %v517, %v516
      %v537 = vpack.c.b16 %v519, %v518
      %v538 = vpack.c.b16 %v521, %v520
      %v539 = vpack.c.b16 %v523, %v522
      %556 = vmatprep.subr.bf16.mxu0 0
      %557 = vmatpush1.bf16.msra.mxu0 %v531
      %558 = vmatprep.subr.bf16.mxu0 0
      %559 = vmatpush1.bf16.msra.mxu0 %v530
      %560 = vmatprep.subr.bf16.mxu0 0
      %561 = vmatpush1.bf16.msra.mxu0 %v529
      %562 = vmatprep.subr.bf16.mxu0 0
      %563 = vmatpush1.bf16.msra.mxu0 %v528
      %564 = vmatprep.subr.bf16.mxu0 0
      %565 = vmatpush1.bf16.msra.mxu0 %v527
      %566 = vmatprep.subr.bf16.mxu0 0
      %567 = vmatpush1.bf16.msra.mxu0 %v526
      %568 = vmatprep.subr.bf16.mxu0 0
      %569 = vmatpush1.bf16.msra.mxu0 %v525
      %570 = vmatprep.subr.bf16.mxu0 0
      %571 = vmatpush1.bf16.msra.mxu0 %v524
      %572 = vmatprep.subr.bf16.mxu0 0
      %573 = vmatpush2.bf16.msra.mxu0 %v539
      %574 = vmatprep.subr.bf16.mxu0 0
      %575 = vmatpush2.bf16.msra.mxu0 %v538
      %576 = vmatprep.subr.bf16.mxu0 0
      %577 = vmatpush2.bf16.msra.mxu0 %v537
      %578 = vmatprep.subr.bf16.mxu0 0
      %579 = vmatpush2.bf16.msra.mxu0 %v536
      %580 = vmatprep.subr.bf16.mxu0 0
      %581 = vmatpush2.bf16.msra.mxu0 %v535
      %582 = vmatprep.subr.bf16.mxu0 0
      %583 = vmatpush2.bf16.msra.mxu0 %v534
      %584 = vmatprep.subr.bf16.mxu0 0
      %585 = vmatpush2.bf16.msra.mxu0 %v533
      %586 = vmatprep.subr.bf16.mxu0 0
      %587 = vmatpush2.bf16.msra.mxu0 %v532
      %588 = vmatprep.mubr.bf16.mxu0 %v397
      %589 = vmatmul.mubr.bf16.gmra.mxu0 %v396
      %v590 = vpop.f32.mrf.mxu0
      %v591 = vadd.f32 %v298, %v590
      %v592 = vpop.f32.mrf.mxu0
      %v593 = vpop.f32.mrf.mxu0
      %v594 = vadd.f32 %v298, %v593
      %v595 = vpop.f32.mrf.mxu0
      %596 = vmatprep.mubr.bf16.mxu0 %v399
      %597 = vmatmul.mubr.bf16.gmra.mxu0 %v398
      %v598 = vpop.f32.mrf.mxu0
      %v599 = vadd.f32 %v298, %v598
      %v600 = vpop.f32.mrf.mxu0
      %v601 = vpop.f32.mrf.mxu0
      %v602 = vadd.f32 %v298, %v601
      %v603 = vpop.f32.mrf.mxu0
      %604 = vmatprep.mubr.bf16.mxu0 %v401
      %605 = vmatmul.mubr.bf16.gmra.mxu0 %v400
      %v606 = vpop.f32.mrf.mxu0
      %v607 = vadd.f32 %v298, %v606
      %v608 = vpop.f32.mrf.mxu0
      %v609 = vpop.f32.mrf.mxu0
      %v610 = vadd.f32 %v298, %v609
      %v611 = vpop.f32.mrf.mxu0
      %612 = vmatprep.mubr.bf16.mxu0 %v403
      %613 = vmatmul.mubr.bf16.gmra.mxu0 %v402
      %v614 = vpop.f32.mrf.mxu0
      %v615 = vadd.f32 %v298, %v614
      %v616 = vpop.f32.mrf.mxu0
      %v617 = vpop.f32.mrf.mxu0
      %v618 = vadd.f32 %v298, %v617
      %v619 = vpop.f32.mrf.mxu0
      %620 = vmatprep.mubr.bf16.mxu0 %v405
      %621 = vmatmul.mubr.bf16.gmra.mxu0 %v404
      %v622 = vpop.f32.mrf.mxu0
      %v623 = vadd.f32 %v298, %v622
      %v624 = vpop.f32.mrf.mxu0
      %v625 = vpop.f32.mrf.mxu0
      %v626 = vadd.f32 %v298, %v625
      %v627 = vpop.f32.mrf.mxu0
      %628 = vmatprep.mubr.bf16.mxu0 %v407
      %629 = vmatmul.mubr.bf16.gmra.mxu0 %v406
      %v630 = vpop.f32.mrf.mxu0
      %v631 = vadd.f32 %v298, %v630
      %v632 = vpop.f32.mrf.mxu0
      %v633 = vpop.f32.mrf.mxu0
      %v634 = vadd.f32 %v298, %v633
      %v635 = vpop.f32.mrf.mxu0
      %636 = vmatprep.mubr.bf16.mxu0 %v409
      %637 = vmatmul.mubr.bf16.gmra.mxu0 %v408
      %v638 = vpop.f32.mrf.mxu0
      %v639 = vadd.f32 %v298, %v638
      %v640 = vpop.f32.mrf.mxu0
      %v641 = vpop.f32.mrf.mxu0
      %v642 = vadd.f32 %v298, %v641
      %v643 = vpop.f32.mrf.mxu0
      %644 = vmatprep.mubr.bf16.mxu0 %v411
      %645 = vmatmul.mubr.bf16.gmra.mxu0 %v410
      %v646 = vpop.f32.mrf.mxu0
      %v647 = vadd.f32 %v298, %v646
      %v648 = vpop.f32.mrf.mxu0
      %v649 = vpop.f32.mrf.mxu0
      %v650 = vadd.f32 %v298, %v649
      %v651 = vpop.f32.mrf.mxu0
      %652 = vmatprep.mubr.bf16.mxu0 %v413
      %653 = vmatmul.mubr.bf16.gmra.mxu0 %v412
      %v654 = vpop.f32.mrf.mxu0
      %v655 = vadd.f32 %v298, %v654
      %v656 = vpop.f32.mrf.mxu0
      %v657 = vpop.f32.mrf.mxu0
      %v658 = vadd.f32 %v298, %v657
      %v659 = vpop.f32.mrf.mxu0
      %660 = vmatprep.mubr.bf16.mxu0 %v415
      %661 = vmatmul.mubr.bf16.gmra.mxu0 %v414
      %v662 = vpop.f32.mrf.mxu0
      %v663 = vadd.f32 %v298, %v662
      %v664 = vpop.f32.mrf.mxu0
      %v665 = vpop.f32.mrf.mxu0
      %v666 = vadd.f32 %v298, %v665
      %v667 = vpop.f32.mrf.mxu0
      %668 = vmatprep.mubr.bf16.mxu0 %v417
      %669 = vmatmul.mubr.bf16.gmra.mxu0 %v416
      %v670 = vpop.f32.mrf.mxu0
      %v671 = vadd.f32 %v298, %v670
      %v672 = vpop.f32.mrf.mxu0
      %v673 = vpop.f32.mrf.mxu0
      %v674 = vadd.f32 %v298, %v673
      %v675 = vpop.f32.mrf.mxu0
      %676 = vmatprep.mubr.bf16.mxu0 %v419
      %677 = vmatmul.mubr.bf16.gmra.mxu0 %v418
      %v678 = vpop.f32.mrf.mxu0
      %v679 = vadd.f32 %v298, %v678
      %v680 = vpop.f32.mrf.mxu0
      %v681 = vpop.f32.mrf.mxu0
      %v682 = vadd.f32 %v298, %v681
      %v683 = vpop.f32.mrf.mxu0
      %684 = vmatprep.mubr.bf16.mxu0 %v421
      %685 = vmatmul.mubr.bf16.gmra.mxu0 %v420
      %v686 = vpop.f32.mrf.mxu0
      %v687 = vadd.f32 %v298, %v686
      %v688 = vpop.f32.mrf.mxu0
      %v689 = vpop.f32.mrf.mxu0
      %v690 = vadd.f32 %v298, %v689
      %v691 = vpop.f32.mrf.mxu0
      %692 = vmatprep.mubr.bf16.mxu0 %v423
      %693 = vmatmul.mubr.bf16.gmra.mxu0 %v422
      %v694 = vpop.f32.mrf.mxu0
      %v695 = vadd.f32 %v298, %v694
      %v696 = vpop.f32.mrf.mxu0
      %v697 = vpop.f32.mrf.mxu0
      %v698 = vadd.f32 %v298, %v697
      %v699 = vpop.f32.mrf.mxu0
      %700 = vmatprep.mubr.bf16.mxu0 %v425
      %701 = vmatmul.mubr.bf16.gmra.mxu0 %v424
      %v702 = vpop.f32.mrf.mxu0
      %v703 = vadd.f32 %v298, %v702
      %v704 = vpop.f32.mrf.mxu0
      %v705 = vpop.f32.mrf.mxu0
      %v706 = vadd.f32 %v298, %v705
      %v707 = vpop.f32.mrf.mxu0
      %708 = vmatprep.mubr.bf16.mxu0 %v427
      %709 = vmatmul.mubr.bf16.gmra.mxu0 %v426
      %v710 = vpop.f32.mrf.mxu0
      %v711 = vadd.f32 %v298, %v710
      %v712 = vpop.f32.mrf.mxu0
      %v713 = vpop.f32.mrf.mxu0
      %v714 = vadd.f32 %v298, %v713
      %v715 = vpop.f32.mrf.mxu0
      %716 = vdwg.mxu0
      %v717 = vmax.f32 %v591, 0.0
      %v718 = vmax.f32 %v594, 0.0
      %v719 = vmax.f32 %v599, 0.0
      %v720 = vmax.f32 %v602, 0.0
      %v721 = vmax.f32 %v607, 0.0
      %v722 = vmax.f32 %v610, 0.0
      %v723 = vmax.f32 %v615, 0.0
      %v724 = vmax.f32 %v618, 0.0
      %v725 = vmax.f32 %v623, 0.0
      %v726 = vmax.f32 %v626, 0.0
      %v727 = vmax.f32 %v631, 0.0
      %v728 = vmax.f32 %v634, 0.0
      %v729 = vmax.f32 %v639, 0.0
      %v730 = vmax.f32 %v642, 0.0
      %v731 = vmax.f32 %v647, 0.0
      %v732 = vmax.f32 %v650, 0.0
      %v733 = vmax.f32 %v655, 0.0
      %v734 = vmax.f32 %v658, 0.0
      %v735 = vmax.f32 %v663, 0.0
      %v736 = vmax.f32 %v666, 0.0
      %v737 = vmax.f32 %v671, 0.0
      %v738 = vmax.f32 %v674, 0.0
      %v739 = vmax.f32 %v679, 0.0
      %v740 = vmax.f32 %v682, 0.0
      %v741 = vmax.f32 %v687, 0.0
      %v742 = vmax.f32 %v690, 0.0
      %v743 = vmax.f32 %v695, 0.0
      %v744 = vmax.f32 %v698, 0.0
      %v745 = vmax.f32 %v703, 0.0
      %v746 = vmax.f32 %v706, 0.0
      %v747 = vmax.f32 %v711, 0.0
      %v748 = vmax.f32 %v714, 0.0
      %v749 = vpack.c.bf16 %v718, %v717
      %v750 = vpack.c.bf16 %v720, %v719
      %v751 = vpack.c.bf16 %v722, %v721
      %v752 = vpack.c.bf16 %v724, %v723
      %v753 = vpack.c.bf16 %v726, %v725
      %v754 = vpack.c.bf16 %v728, %v727
      %v755 = vpack.c.bf16 %v730, %v729
      %v756 = vpack.c.bf16 %v732, %v731
      %v757 = vpack.c.bf16 %v734, %v733
      %v758 = vpack.c.bf16 %v736, %v735
      %v759 = vpack.c.bf16 %v738, %v737
      %v760 = vpack.c.bf16 %v740, %v739
      %v761 = vpack.c.bf16 %v742, %v741
      %v762 = vpack.c.bf16 %v744, %v743
      %v763 = vpack.c.bf16 %v746, %v745
      %v764 = vpack.c.bf16 %v748, %v747
      %v781 = vunpack.c.l.b16 %v749
      %v782 = vunpack.c.h.b16 %v749
      %v783 = vunpack.c.l.b16 %v750
      %v784 = vunpack.c.h.b16 %v750
      %v785 = vunpack.c.l.b16 %v751
      %v786 = vunpack.c.h.b16 %v751
      %v787 = vunpack.c.l.b16 %v752
      %v788 = vunpack.c.h.b16 %v752
      %v789 = vunpack.c.l.b16 %v753
      %v790 = vunpack.c.h.b16 %v753
      %v791 = vunpack.c.l.b16 %v754
      %v792 = vunpack.c.h.b16 %v754
      %v793 = vunpack.c.l.b16 %v755
      %v794 = vunpack.c.h.b16 %v755
      %v795 = vunpack.c.l.b16 %v756
      %v796 = vunpack.c.h.b16 %v756
      %v797 = vunpack.c.l.b16 %v757
      %v798 = vunpack.c.h.b16 %v757
      %v799 = vunpack.c.l.b16 %v758
      %v800 = vunpack.c.h.b16 %v758
      %v801 = vunpack.c.l.b16 %v759
      %v802 = vunpack.c.h.b16 %v759
      %v803 = vunpack.c.l.b16 %v760
      %v804 = vunpack.c.h.b16 %v760
      %v805 = vunpack.c.l.b16 %v761
      %v806 = vunpack.c.h.b16 %v761
      %v807 = vunpack.c.l.b16 %v762
      %v808 = vunpack.c.h.b16 %v762
      %v809 = vunpack.c.l.b16 %v763
      %v810 = vunpack.c.h.b16 %v763
      %v811 = vunpack.c.l.b16 %v764
      %v812 = vunpack.c.h.b16 %v764
      %v813 = vpack.c.b16 %v781, %v781
      %v814 = vpack.c.b16 %v782, %v782
      %v815 = vpack.c.b16 %v783, %v783
      %v816 = vpack.c.b16 %v784, %v784
      %v817 = vpack.c.b16 %v785, %v785
      %v818 = vpack.c.b16 %v786, %v786
      %v819 = vpack.c.b16 %v787, %v787
      %v820 = vpack.c.b16 %v788, %v788
      %v821 = vpack.c.b16 %v789, %v789
      %v822 = vpack.c.b16 %v790, %v790
      %v823 = vpack.c.b16 %v791, %v791
      %v824 = vpack.c.b16 %v792, %v792
      %v825 = vpack.c.b16 %v793, %v793
      %v826 = vpack.c.b16 %v794, %v794
      %v827 = vpack.c.b16 %v795, %v795
      %v828 = vpack.c.b16 %v796, %v796
      %v829 = vpack.c.b16 %v797, %v797
      %v830 = vpack.c.b16 %v798, %v798
      %v831 = vpack.c.b16 %v799, %v799
      %v832 = vpack.c.b16 %v800, %v800
      %v833 = vpack.c.b16 %v801, %v801
      %v834 = vpack.c.b16 %v802, %v802
      %v835 = vpack.c.b16 %v803, %v803
      %v836 = vpack.c.b16 %v804, %v804
      %v837 = vpack.c.b16 %v805, %v805
      %v838 = vpack.c.b16 %v806, %v806
      %v839 = vpack.c.b16 %v807, %v807
      %v840 = vpack.c.b16 %v808, %v808
      %v841 = vpack.c.b16 %v809, %v809
      %v842 = vpack.c.b16 %v810, %v810
      %v843 = vpack.c.b16 %v811, %v811
      %v844 = vpack.c.b16 %v812, %v812
      %877 = vst [vmem:[%s226] sm:$0xf] %v813
      %878 = vst [vmem:[%s226 + $0x4] sm:$0xf] %v814
      %879 = vst [vmem:[%s226 + $0x8] sm:$0xf] %v815
      %880 = vst [vmem:[%s226 + $0xc] sm:$0xf] %v816
      %881 = vst [vmem:[%s226 + $0x10] sm:$0xf] %v817
      %882 = vst [vmem:[%s226 + $0x14] sm:$0xf] %v818
      %883 = vst [vmem:[%s226 + $0x18] sm:$0xf] %v819
      %884 = vst [vmem:[%s226 + $0x1c] sm:$0xf] %v820
      %885 = vst [vmem:[%s226 + $0x20] sm:$0xf] %v821
      %886 = vst [vmem:[%s226 + $0x24] sm:$0xf] %v822
      %887 = vst [vmem:[%s226 + $0x28] sm:$0xf] %v823
      %888 = vst [vmem:[%s226 + $0x2c] sm:$0xf] %v824
      %889 = vst [vmem:[%s226 + $0x30] sm:$0xf] %v825
      %890 = vst [vmem:[%s226 + $0x34] sm:$0xf] %v826
      %891 = vst [vmem:[%s226 + $0x38] sm:$0xf] %v827
      %892 = vst [vmem:[%s226 + $0x3c] sm:$0xf] %v828
      %893 = vst [vmem:[%s226 + $0x40] sm:$0xf] %v829
      %894 = vst [vmem:[%s226 + $0x44] sm:$0xf] %v830
      %895 = vst [vmem:[%s226 + $0x48] sm:$0xf] %v831
      %896 = vst [vmem:[%s226 + $0x4c] sm:$0xf] %v832
      %897 = vst [vmem:[%s226 + $0x50] sm:$0xf] %v833
      %898 = vst [vmem:[%s226 + $0x54] sm:$0xf] %v834
      %899 = vst [vmem:[%s226 + $0x58] sm:$0xf] %v835
      %900 = vst [vmem:[%s226 + $0x5c] sm:$0xf] %v836
      %901 = vst [vmem:[%s226 + $0x60] sm:$0xf] %v837
      %902 = vst [vmem:[%s226 + $0x64] sm:$0xf] %v838
      %903 = vst [vmem:[%s226 + $0x68] sm:$0xf] %v839
      %904 = vst [vmem:[%s226 + $0x6c] sm:$0xf] %v840
      %905 = vst [vmem:[%s226 + $0x70] sm:$0xf] %v841
      %906 = vst [vmem:[%s226 + $0x74] sm:$0xf] %v842
      %907 = vst [vmem:[%s226 + $0x78] sm:$0xf] %v843
      %908 = vst [vmem:[%s226 + $0x7c] sm:$0xf] %v844
      %s909 = smul.u32 32, %s18
      %p910 = scmp.lt.s32.totalorder %s909, 255
      %s911 = scalar_select %p910, %s909, 255
      %p912 = scmp.lt.s32.totalorder %s19, 0
      %s913 = scalar_select %p912, %s19, 0
      %s914 = sadd.s32 %s913, %s911
      %s915 = smul.addr %s914, 4
      %s916 = scalar_lea.vmem %s3, %s915
      // Predicated region
      $region33: #{matmul_bn_act.1} parent=31 // pred_check
        %p917 = pneg %p124
      $region34: #{matmul_bn_act.1} parent=31 // pred_check_branch
        %919 = sbr.rel (%p917) target = $region36
      $region35: #{matmul_bn_act.1} parent=31 // pred_region
        %s920 = smul.u32 32, %s18
      $region36: #{matmul_bn_act.1} parent=31 // pred_fallthru
        _
    $region32: #{matmul_bn_act.1} parent=5 // pred_fallthru
      _
    %p921 = scmp.le.s32.totalorder 2, %s9
    // Predicated region
    $region37: #{matmul_bn_act.1} parent=5 // pred_check
      %p922 = pneg %p921
    $region38: #{matmul_bn_act.1} parent=5 // pred_check_branch
      %924 = sbr.rel (%p922) target = $region40
    $region39: #{matmul_bn_act.1} parent=5 // pred_region
      %s925 = ssub.s32 %s9, 2
      // Predicated region
      $region41: #{matmul_bn_act.1} parent=39 // pred_check
        %p926 = pneg %p130
      $region42: #{matmul_bn_act.1} parent=39 // pred_check_branch
        %928 = sbr.rel (%p926) target = $region44
      $region43: #{matmul_bn_act.1} parent=39 // pred_region
        %s929 = smul.u32 32, %s20
        %p930 = scmp.lt.s32.totalorder %s929, 255
        %s931 = scalar_select %p930, %s929, 255
        %p932 = scmp.lt.s32.totalorder %s21, 0
        %s933 = scalar_select %p932, %s21, 0
        %s934 = sadd.s32 %s933, %s931
        %s935 = smul.addr %s934, 4
        %s936 = scalar_lea.vmem %s3, %s935
      $region44: #{matmul_bn_act.1} parent=39 // pred_fallthru
        _
    $region40: #{matmul_bn_act.1} parent=5 // pred_fallthru
      _
  $region6: #{matmul_bn_act.1} parent=0 // loop_footer
    %s13 = sadd.s32 1, %s9
  $region7: #{matmul_bn_act.1} parent=0 // loop_footer_branch
    %8 = sbr.rel target = $region3
  $region8: #{matmul_bn_act.1} parent=0 // loop_exit
    _

</llo_original>
